<compile_context>
chip_gen: v5e
topology: v5e:2x2
jax: 0.10.0
libtpu: 0.0.40
codegen_flags: <defaults>
</compile_context>

<pallas_src>
import functools

import jax
import jax.numpy as jnp
from jax import lax
from jax.experimental import pallas as pl
from jax.experimental.pallas import tpu as pltpu


def _vmem_limit_bytes():
    """Chip-aware VMEM limit: ~3/4 of physical, clamped to [32, 96] MiB."""
    cap = 64 * 1024 * 1024
    try:
        cap = int(getattr(pltpu.get_tpu_info(), "vmem_capacity_bytes", cap))
    except Exception:
        pass
    return int(max(32 * 1024 * 1024, min(96 * 1024 * 1024, (cap * 3) // 4)))


def temporal_block_kernel(xs_ref, xr_ref, w1_ref, b1_ref, w2_ref, b2_ref,
                          wd_ref, bd_ref, o_ref, *, K, d, pad, T, P, NP):
    """One lane-tile of T output positions per grid step.

    xs_ref : (K*Cin, G+2*pad) bf16  tap-stacked, pre-shifted flattened input:
                                    row-block k at column c = x_flat[:, c - 2*pad + k*d]
    xr_ref : (Cin, G)         bf16  flattened per-batch-padded input (residual)
    w1_ref : (Cout, K*Cin)    bf16  conv1 weight, taps fused along contraction
    w2_ref : (Cout, K*Cout)   bf16  conv2 weight, taps fused along contraction
    wd_ref : (Cout, Cin)      bf16  1x1 downsample weight
    b*_ref : (Cout, 1)        f32
    o_ref  : (Cout, T)        bf16  output tile
    """
    i = pl.program_id(0)
    base = pl.multiple_of(i * T, T)

    # ---- conv1: all K taps in one MXU matmul (lane-aligned ref load) ----
    xs = xs_ref[:, pl.ds(base, T + pad)]                      # (K*Cin, T+pad)
    acc1 = jnp.dot(w1_ref[...], xs, preferred_element_type=jnp.float32)

    # validity mask computed in-register (no mask input): h1 column j maps to
    # flattened position p = base + j - pad; it is a real conv1 output iff
    # 0 <= p < NP and p is not inside a batch's causal-pad region.
    col = base - pad + lax.broadcasted_iota(jnp.int32, (1, T + pad), 1)
    valid = (col >= 0) & (col < NP) & (col % P >= pad)
    # ReLU, dropout1 = identity (eval), then zero the invalid columns so conv2
    # never leaks across batch boundaries / into the alignment tail.
    h1 = jnp.where(valid, jnp.maximum(acc1 + b1_ref[...], 0.0), 0.0)
    h1b = h1.astype(jnp.bfloat16)                             # (Cout, T+pad)

    # ---- conv2: K shifted in-register windows stacked -> one matmul ----
    hs = jnp.concatenate([h1b[:, k * d:k * d + T] for k in range(K)], axis=0)
    acc2 = jnp.dot(w2_ref[...], hs, preferred_element_type=jnp.float32)
    h2 = jnp.maximum(acc2 + b2_ref[...], 0.0)                 # ReLU; dropout2=id

    # ---- residual: 1x1 downsample conv on the aligned input tile --------
    res = jnp.dot(wd_ref[...], xr_ref[:, pl.ds(base, T)],
                  preferred_element_type=jnp.float32) + bd_ref[...]

    # ---- final ReLU(out + res), stored as bf16 (f32 accumulation) -------
    o_ref[...] = jnp.maximum(h2 + res, 0.0).astype(o_ref.dtype)


def temporal_block(x, w1, b1, w2, b2, wd, bd, *, kernel_size, dilation,
                   lane_tile=2048, out_dtype=jnp.float32):
    """x: (N, Cin, L) float32. Conv weights are effective (post weight-norm)."""
    N, Cin, L = x.shape
    Cout = w1.shape[0]
    K = kernel_size
    d = dilation
    pad = (K - 1) * d
    P = pad + L                      # per-batch chunk length (pad + seq)
    NP = N * P

    # lane tile: multiple of 128, large to amortize per-step overhead, but
    # keep >= 2 grid steps when there is enough work (v7x has 2 TensorCores).
    lane_tile = max(128, (int(lane_tile) // 128) * 128)
    G128 = ((NP + 127) // 128) * 128
    T = min(lane_tile, G128)
    if G128 >= 256 and T >= G128:
        T = ((G128 // 2) // 128) * 128
    G = ((NP + T - 1) // T) * T
    nt = G // T
    Wx = G + 2 * pad

    # bf16 first, then a single pad + transpose pass (half the wrapper traffic)
    xb = x.astype(jnp.bfloat16)
    xp = jnp.pad(xb, ((0, 0), (0, 0), (pad, 0)))               # (N, Cin, P)
    xf = jnp.transpose(xp, (1, 0, 2)).reshape(Cin, NP)         # (Cin, N*P)

    # residual-branch input, tail-padded to the lane-tiled length
    xr = jnp.pad(xf, ((0, 0), (0, G - NP)))                    # (Cin, G)

    # conv1 operand with taps pre-stacked along sublanes: block k is x_flat
    # shifted right by (2*pad - k*d), so every in-kernel load is lane-aligned
    # and conv1 becomes a single matmul over a (K*Cin)-deep contraction.
    xs = jnp.concatenate(
        [jnp.pad(xf, ((0, 0), (2 * pad - k * d, Wx - NP - (2 * pad - k * d))))
         for k in range(K)], axis=0)                           # (K*Cin, Wx)

    # tap-fused bf16 weights; f32 lane-broadcast biases
    w1f = jnp.transpose(w1, (0, 2, 1)).reshape(Cout, K * Cin).astype(jnp.bfloat16)
    w2f = jnp.transpose(w2, (0, 2, 1)).reshape(Cout, K * Cout).astype(jnp.bfloat16)
    wdr = wd.astype(jnp.bfloat16)                              # (Cout, Cin)
    b1c = b1.reshape(Cout, 1).astype(jnp.float32)
    b2c = b2.reshape(Cout, 1).astype(jnp.float32)
    bdc = bd.reshape(Cout, 1).astype(jnp.float32)

    kernel = functools.partial(temporal_block_kernel,
                               K=K, d=d, pad=pad, T=T, P=P, NP=NP)

    def run(const):
        # `const` marks constant-index resident inputs (never re-DMA'd across
        # grid steps) so they can be single-buffered.
        in_specs = [
            pl.BlockSpec((K * Cin, Wx), lambda i: (0, 0), **const),
            pl.BlockSpec((Cin, G), lambda i: (0, 0), **const),
            pl.BlockSpec((Cout, K * Cin), lambda i: (0, 0), **const),
            pl.BlockSpec((Cout, 1), lambda i: (0, 0), **const),
            pl.BlockSpec((Cout, K * Cout), lambda i: (0, 0), **const),
            pl.BlockSpec((Cout, 1), lambda i: (0, 0), **const),
            pl.BlockSpec((Cout, Cin), lambda i: (0, 0), **const),
            pl.BlockSpec((Cout, 1), lambda i: (0, 0), **const),
        ]
        return pl.pallas_call(
            kernel,
            out_shape=jax.ShapeDtypeStruct((Cout, G), jnp.bfloat16),
            grid_spec=pltpu.PrefetchScalarGridSpec(
                num_scalar_prefetch=0,
                grid=(nt,),
                in_specs=in_specs,
                out_specs=pl.BlockSpec((Cout, T), lambda i: (0, i)),
            ),
            compiler_params=pltpu.CompilerParams(
                dimension_semantics=("parallel",),
                vmem_limit_bytes=_vmem_limit_bytes()),
        )(xs, xr, w1f, b1c, w2f, b2c, wdr, bdc)

    try:
        yfull = run(dict(pipeline_mode=pl.Buffered(1)))
    except Exception:  # older jax without BlockSpec.pipeline_mode support
        yfull = run({})

    # drop per-batch pad columns and the alignment tail, back to (N, Cout, L)
    y = yfull[:, :NP].reshape(Cout, N, P)[:, :, pad:]
    return jnp.transpose(y, (1, 0, 2)).astype(out_dtype)


def weight_norm_effective(v, g):
    """PyTorch weight_norm (dim=0): w = g * v / ||v||, norm over all dims but 0."""
    norm = jnp.sqrt(jnp.sum(v * v, axis=tuple(range(1, v.ndim)), keepdims=True))
    return g.reshape((-1,) + (1,) * (v.ndim - 1)) * v / norm


def ref_forward(x, w1, b1, w2, b2, wd, bd, *, kernel_size, dilation):
    """Pure-JAX f32 reference mirroring the PyTorch module (eval mode)."""
    pad = (kernel_size - 1) * dilation
    dn = ("NCH", "OIH", "NCH")

    def causal_conv(inp, w, b):
        y = lax.conv_general_dilated(
            inp, w, window_strides=(1,), padding=[(pad, 0)],
            rhs_dilation=(dilation,), dimension_numbers=dn)
        return y + b[None, :, None]

    out = jnp.maximum(causal_conv(x, w1, b1), 0.0)
    out = jnp.maximum(causal_conv(out, w2, b2), 0.0)
    res = jnp.einsum("oi,nil->nol", wd, x) + bd[None, :, None]
    return jnp.maximum(out + res, 0.0)


if __name__ == "__main__":
    # shapes consistent with TemporalBlock(n_inputs=4, n_outputs=8,
    # kernel_size=3, stride=1, dilation=2, padding=(3-1)*2)
    N, Cin, Cout, L = 2, 4, 8, 16
    K, dilation = 3, 2

    key = jax.random.PRNGKey(0)
    k0, k1, k2, k3, k4, k5, k6, k7, k8 = jax.random.split(key, 9)

    x = jax.random.normal(k0, (N, Cin, L), dtype=jnp.float32)

    # conv1 / conv2 are weight_norm'd: keep (v, g) and build effective weight
    v1 = jax.random.normal(k1, (Cout, Cin, K), dtype=jnp.float32)
    g1 = jax.random.uniform(k2, (Cout,), minval=0.5, maxval=1.5, dtype=jnp.float32)
    v2 = jax.random.normal(k3, (Cout, Cout, K), dtype=jnp.float32)
    g2 = jax.random.uniform(k4, (Cout,), minval=0.5, maxval=1.5, dtype=jnp.float32)
    w1 = weight_norm_effective(v1, g1)
    w2 = weight_norm_effective(v2, g2)
    b1 = jax.random.normal(k5, (Cout,), dtype=jnp.float32) * 0.1
    b2 = jax.random.normal(k6, (Cout,), dtype=jnp.float32) * 0.1

    # 1x1 downsample conv (n_inputs != n_outputs)
    wd = jax.random.normal(k7, (Cout, Cin), dtype=jnp.float32)
    bd = jax.random.normal(k8, (Cout,), dtype=jnp.float32) * 0.1

    y = temporal_block(x, w1, b1, w2, b2, wd, bd,
                       kernel_size=K, dilation=dilation)
    y = jax.block_until_ready(y)

    y_ref = ref_forward(x, w1, b1, w2, b2, wd, bd,
                        kernel_size=K, dilation=dilation)
    assert y.shape == (N, Cout, L)

    # bf16 MXU operands / bf16 output store with f32 accumulation -> compare
    # with a relaxed, scale-aware tolerance against the pure-f32 reference.
    err = float(jnp.max(jnp.abs(y - y_ref)))
    scale = float(jnp.max(jnp.abs(y_ref))) + 1e-6
    assert err <= 0.05 * scale + 1e-2, f"mismatch vs reference: err={err}, scale={scale}"

    print("KERNEL_OK")
</pallas_src>

<mosaic_0001>
module attributes {stable_mosaic.version = 11 : i64} {
  func.func @temporal_block_kernel(%arg0: i32, %arg1: memref<12x136xbf16, #tpu.memory_space<vmem>>, %arg2: memref<4x128xbf16, #tpu.memory_space<vmem>>, %arg3: memref<8x12xbf16, #tpu.memory_space<vmem>>, %arg4: memref<8x1xf32, #tpu.memory_space<vmem>>, %arg5: memref<8x24xbf16, #tpu.memory_space<vmem>>, %arg6: memref<8x1xf32, #tpu.memory_space<vmem>>, %arg7: memref<8x4xbf16, #tpu.memory_space<vmem>>, %arg8: memref<8x1xf32, #tpu.memory_space<vmem>>, %arg9: memref<8x128xbf16, #tpu.memory_space<vmem>>) attributes {dimension_semantics = [#tpu.dimension_semantics<parallel>], iteration_bounds = array<i64: 1>, scalar_prefetch = 0 : i64, scratch_operands = 0 : i64, tpu.core_type = #tpu.core_type<tc>, window_params = [{pipeline_mode = #tpu.pipeline_mode<synchronous>, transform_indices = @transform_0, window_bounds = array<i64: 12, 136>}, {pipeline_mode = #tpu.pipeline_mode<synchronous>, transform_indices = @transform_1, window_bounds = array<i64: 4, 128>}, {pipeline_mode = #tpu.pipeline_mode<synchronous>, transform_indices = @transform_2, window_bounds = array<i64: 8, 12>}, {pipeline_mode = #tpu.pipeline_mode<synchronous>, transform_indices = @transform_3, window_bounds = array<i64: 8, 1>}, {pipeline_mode = #tpu.pipeline_mode<synchronous>, transform_indices = @transform_4, window_bounds = array<i64: 8, 24>}, {pipeline_mode = #tpu.pipeline_mode<synchronous>, transform_indices = @transform_5, window_bounds = array<i64: 8, 1>}, {pipeline_mode = #tpu.pipeline_mode<synchronous>, transform_indices = @transform_6, window_bounds = array<i64: 8, 4>}, {pipeline_mode = #tpu.pipeline_mode<synchronous>, transform_indices = @transform_7, window_bounds = array<i64: 8, 1>}, {transform_indices = @transform_8, window_bounds = array<i64: 8, 128>}]} {
    %c128_i32 = arith.constant 128 : i32
    %0 = arith.muli %arg0, %c128_i32 : i32
    %1 = tpu.assume_multiple %0, 128 : i32
    %c0 = arith.constant 0 : index
    %2 = arith.index_cast %1 : i32 to index
    %3 = vector.load %arg1[%c0, %2] : memref<12x136xbf16, #tpu.memory_space<vmem>>, vector<12x132xbf16>
    %c0_0 = arith.constant 0 : index
    %c0_1 = arith.constant 0 : index
    %4 = vector.load %arg3[%c0_0, %c0_1] : memref<8x12xbf16, #tpu.memory_space<vmem>>, vector<8x12xbf16>
    %cst = arith.constant dense<0.000000e+00> : vector<8x132xf32>
    %5 = tpu.matmul %4, %3, %cst {dimension_numbers = #tpu.dot_dimension_numbers<[1], [0], [0], [1], [0, 0, 1, 1], [], []>} : vector<8x12xbf16>, vector<12x132xbf16>, vector<8x132xf32> -> vector<8x132xf32>
    %c4_i32 = arith.constant 4 : i32
    %6 = arith.subi %1, %c4_i32 : i32
    %7 = tpu.iota {dimensions = array<i32: 1>} : vector<1x132xi32>
    %8 = vector.broadcast %6 : i32 to vector<1x132xi32>
    %9 = arith.addi %8, %7 : vector<1x132xi32>
    %c0_i32 = arith.constant 0 : i32
    %10 = vector.broadcast %c0_i32 : i32 to vector<1x132xi32>
    %11 = arith.cmpi sge, %9, %10 : vector<1x132xi32>
    %c40_i32 = arith.constant 40 : i32
    %12 = vector.broadcast %c40_i32 : i32 to vector<1x132xi32>
    %13 = arith.cmpi slt, %9, %12 : vector<1x132xi32>
    %14 = arith.andi %11, %13 : vector<1x132xi1>
    %c20_i32 = arith.constant 20 : i32
    %c0_i32_2 = arith.constant 0 : i32
    %15 = arith.cmpi eq, %c20_i32, %c0_i32_2 : i32
    %c1_i32 = arith.constant 1 : i32
    %16 = arith.select %15, %c1_i32, %c20_i32 : i32
    %17 = vector.broadcast %16 : i32 to vector<1x132xi32>
    %18 = arith.remsi %9, %17 : vector<1x132xi32>
    %c0_i32_3 = arith.constant 0 : i32
    %19 = vector.broadcast %c0_i32_3 : i32 to vector<1x132xi32>
    %20 = arith.cmpi ne, %18, %19 : vector<1x132xi32>
    %c0_i32_4 = arith.constant 0 : i32
    %21 = vector.broadcast %c0_i32_4 : i32 to vector<1x132xi32>
    %22 = arith.cmpi slt, %18, %21 : vector<1x132xi32>
    %c0_i32_5 = arith.constant 0 : i32
    %23 = arith.cmpi slt, %16, %c0_i32_5 : i32
    %24 = vector.broadcast %23 : i1 to vector<1x132xi1>
    %25 = vector.broadcast %24 : vector<1x132xi1> to vector<1x132xi1>
    %26 = arith.xori %22, %25 : vector<1x132xi1>
    %27 = arith.andi %26, %20 : vector<1x132xi1>
    %28 = vector.broadcast %16 : i32 to vector<1x132xi32>
    %29 = arith.addi %18, %28 : vector<1x132xi32>
    %30 = arith.select %27, %29, %18 : vector<1x132xi1>, vector<1x132xi32>
    %c4_i32_6 = arith.constant 4 : i32
    %31 = vector.broadcast %c4_i32_6 : i32 to vector<1x132xi32>
    %32 = arith.cmpi sge, %30, %31 : vector<1x132xi32>
    %33 = arith.andi %14, %32 : vector<1x132xi1>
    %c0_7 = arith.constant 0 : index
    %c0_8 = arith.constant 0 : index
    %34 = vector.load %arg4[%c0_7, %c0_8] : memref<8x1xf32, #tpu.memory_space<vmem>>, vector<8x1xf32>
    %35 = vector.broadcast %34 : vector<8x1xf32> to vector<8x132xf32>
    %36 = arith.addf %5, %35 : vector<8x132xf32>
    %cst_9 = arith.constant 0.000000e+00 : f32
    %37 = vector.broadcast %cst_9 : f32 to vector<8x132xf32>
    %38 = arith.maximumf %36, %37 : vector<8x132xf32>
    %cst_10 = arith.constant 0.000000e+00 : f32
    %39 = vector.shape_cast %33 : vector<1x132xi1> to vector<1x132xi1>
    %40 = vector.broadcast %39 : vector<1x132xi1> to vector<8x132xi1>
    %41 = vector.broadcast %cst_10 : f32 to vector<8x132xf32>
    %42 = arith.select %40, %38, %41 : vector<8x132xi1>, vector<8x132xf32>
    %43 = arith.truncf %42 : vector<8x132xf32> to vector<8x132xbf16>
    %44 = vector.extract_strided_slice %43 {offsets = [0, 0], sizes = [8, 128], strides = [1, 1]} : vector<8x132xbf16> to vector<8x128xbf16>
    %45 = vector.extract_strided_slice %43 {offsets = [0, 2], sizes = [8, 128], strides = [1, 1]} : vector<8x132xbf16> to vector<8x128xbf16>
    %46 = vector.extract_strided_slice %43 {offsets = [0, 4], sizes = [8, 128], strides = [1, 1]} : vector<8x132xbf16> to vector<8x128xbf16>
    %47 = tpu.concatenate %44, %45, %46 in 0 : vector<8x128xbf16>, vector<8x128xbf16>, vector<8x128xbf16> -> vector<24x128xbf16>
    %c0_11 = arith.constant 0 : index
    %c0_12 = arith.constant 0 : index
    %48 = vector.load %arg5[%c0_11, %c0_12] : memref<8x24xbf16, #tpu.memory_space<vmem>>, vector<8x24xbf16>
    %cst_13 = arith.constant dense<0.000000e+00> : vector<8x128xf32>
    %49 = tpu.matmul %48, %47, %cst_13 {dimension_numbers = #tpu.dot_dimension_numbers<[1], [0], [0], [1], [0, 0, 1, 1], [], []>} : vector<8x24xbf16>, vector<24x128xbf16>, vector<8x128xf32> -> vector<8x128xf32>
    %c0_14 = arith.constant 0 : index
    %c0_15 = arith.constant 0 : index
    %50 = vector.load %arg6[%c0_14, %c0_15] : memref<8x1xf32, #tpu.memory_space<vmem>>, vector<8x1xf32>
    %51 = vector.broadcast %50 : vector<8x1xf32> to vector<8x128xf32>
    %52 = arith.addf %49, %51 : vector<8x128xf32>
    %cst_16 = arith.constant 0.000000e+00 : f32
    %53 = vector.broadcast %cst_16 : f32 to vector<8x128xf32>
    %54 = arith.maximumf %52, %53 : vector<8x128xf32>
    %c0_17 = arith.constant 0 : index
    %c0_18 = arith.constant 0 : index
    %55 = vector.load %arg7[%c0_17, %c0_18] : memref<8x4xbf16, #tpu.memory_space<vmem>>, vector<8x4xbf16>
    %c0_19 = arith.constant 0 : index
    %56 = arith.index_cast %1 : i32 to index
    %57 = vector.load %arg2[%c0_19, %56] : memref<4x128xbf16, #tpu.memory_space<vmem>>, vector<4x128xbf16>
    %cst_20 = arith.constant dense<0.000000e+00> : vector<8x128xf32>
    %58 = tpu.matmul %55, %57, %cst_20 {dimension_numbers = #tpu.dot_dimension_numbers<[1], [0], [0], [1], [0, 0, 1, 1], [], []>} : vector<8x4xbf16>, vector<4x128xbf16>, vector<8x128xf32> -> vector<8x128xf32>
    %c0_21 = arith.constant 0 : index
    %c0_22 = arith.constant 0 : index
    %59 = vector.load %arg8[%c0_21, %c0_22] : memref<8x1xf32, #tpu.memory_space<vmem>>, vector<8x1xf32>
    %60 = vector.broadcast %59 : vector<8x1xf32> to vector<8x128xf32>
    %61 = arith.addf %58, %60 : vector<8x128xf32>
    %62 = arith.addf %54, %61 : vector<8x128xf32>
    %cst_23 = arith.constant 0.000000e+00 : f32
    %63 = vector.broadcast %cst_23 : f32 to vector<8x128xf32>
    %64 = arith.maximumf %62, %63 : vector<8x128xf32>
    %65 = arith.truncf %64 : vector<8x128xf32> to vector<8x128xbf16>
    %c0_24 = arith.constant 0 : index
    %c0_25 = arith.constant 0 : index
    %66 = vector.load %arg9[%c0_24, %c0_25] : memref<8x128xbf16, #tpu.memory_space<vmem>>, vector<8x128xbf16>
    tpu.vector_store %arg9[%c0_24, %c0_25], %65 {strides = array<i32>} : memref<8x128xbf16, #tpu.memory_space<vmem>>, vector<8x128xbf16>,
    return
  }
  func.func @transform_0(%arg0: i32) -> (i32, i32) {
    %c0_i32 = arith.constant 0 : i32
    %c0_i32_0 = arith.constant 0 : i32
    %c0_i32_1 = arith.constant 0 : i32
    return %c0_i32, %c0_i32_0 : i32, i32
  }
  func.func @transform_1(%arg0: i32) -> (i32, i32) {
    %c0_i32 = arith.constant 0 : i32
    %c0_i32_0 = arith.constant 0 : i32
    %c0_i32_1 = arith.constant 0 : i32
    return %c0_i32, %c0_i32_0 : i32, i32
  }
  func.func @transform_2(%arg0: i32) -> (i32, i32) {
    %c0_i32 = arith.constant 0 : i32
    %c0_i32_0 = arith.constant 0 : i32
    %c0_i32_1 = arith.constant 0 : i32
    return %c0_i32, %c0_i32_0 : i32, i32
  }
  func.func @transform_3(%arg0: i32) -> (i32, i32) {
    %c0_i32 = arith.constant 0 : i32
    %c0_i32_0 = arith.constant 0 : i32
    %c0_i32_1 = arith.constant 0 : i32
    return %c0_i32, %c0_i32_0 : i32, i32
  }
  func.func @transform_4(%arg0: i32) -> (i32, i32) {
    %c0_i32 = arith.constant 0 : i32
    %c0_i32_0 = arith.constant 0 : i32
    %c0_i32_1 = arith.constant 0 : i32
    return %c0_i32, %c0_i32_0 : i32, i32
  }
  func.func @transform_5(%arg0: i32) -> (i32, i32) {
    %c0_i32 = arith.constant 0 : i32
    %c0_i32_0 = arith.constant 0 : i32
    %c0_i32_1 = arith.constant 0 : i32
    return %c0_i32, %c0_i32_0 : i32, i32
  }
  func.func @transform_6(%arg0: i32) -> (i32, i32) {
    %c0_i32 = arith.constant 0 : i32
    %c0_i32_0 = arith.constant 0 : i32
    %c0_i32_1 = arith.constant 0 : i32
    return %c0_i32, %c0_i32_0 : i32, i32
  }
  func.func @transform_7(%arg0: i32) -> (i32, i32) {
    %c0_i32 = arith.constant 0 : i32
    %c0_i32_0 = arith.constant 0 : i32
    %c0_i32_1 = arith.constant 0 : i32
    return %c0_i32, %c0_i32_0 : i32, i32
  }
  func.func @transform_8(%arg0: i32) -> (i32, i32) {
    %c0_i32 = arith.constant 0 : i32
    %c0_i32_0 = arith.constant 0 : i32
    return %c0_i32, %arg0 : i32, i32
  }
}

module attributes {stable_mosaic.version = 11 : i64} {
  func.func @temporal_block_kernel(%arg0: i32, %arg1: memref<12x136xbf16, #tpu.memory_space<vmem>>, %arg2: memref<4x128xbf16, #tpu.memory_space<vmem>>, %arg3: memref<8x12xbf16, #tpu.memory_space<vmem>>, %arg4: memref<8x1xf32, #tpu.memory_space<vmem>>, %arg5: memref<8x24xbf16, #tpu.memory_space<vmem>>, %arg6: memref<8x1xf32, #tpu.memory_space<vmem>>, %arg7: memref<8x4xbf16, #tpu.memory_space<vmem>>, %arg8: memref<8x1xf32, #tpu.memory_space<vmem>>, %arg9: memref<8x128xbf16, #tpu.memory_space<vmem>>) attributes {dimension_semantics = [#tpu.dimension_semantics<parallel>], iteration_bounds = array<i64: 1>, scalar_prefetch = 0 : i64, scratch_operands = 0 : i64, tpu.core_type = #tpu.core_type<tc>, window_params = [{pipeline_mode = #tpu.pipeline_mode<synchronous>, transform_indices = @transform_0, window_bounds = array<i64: 12, 136>}, {pipeline_mode = #tpu.pipeline_mode<synchronous>, transform_indices = @transform_1, window_bounds = array<i64: 4, 128>}, {pipeline_mode = #tpu.pipeline_mode<synchronous>, transform_indices = @transform_2, window_bounds = array<i64: 8, 12>}, {pipeline_mode = #tpu.pipeline_mode<synchronous>, transform_indices = @transform_3, window_bounds = array<i64: 8, 1>}, {pipeline_mode = #tpu.pipeline_mode<synchronous>, transform_indices = @transform_4, window_bounds = array<i64: 8, 24>}, {pipeline_mode = #tpu.pipeline_mode<synchronous>, transform_indices = @transform_5, window_bounds = array<i64: 8, 1>}, {pipeline_mode = #tpu.pipeline_mode<synchronous>, transform_indices = @transform_6, window_bounds = array<i64: 8, 4>}, {pipeline_mode = #tpu.pipeline_mode<synchronous>, transform_indices = @transform_7, window_bounds = array<i64: 8, 1>}, {transform_indices = @transform_8, window_bounds = array<i64: 8, 128>}]} {
    %c128_i32 = arith.constant 128 : i32
    %0 = arith.muli %arg0, %c128_i32 : i32
    %1 = tpu.assume_multiple %0, 128 : i32
    %c0 = arith.constant 0 : index
    %2 = arith.index_cast %1 : i32 to index
    %3 = vector.load %arg1[%c0, %2] : memref<12x136xbf16, #tpu.memory_space<vmem>>, vector<12x132xbf16>
    %c0_0 = arith.constant 0 : index
    %c0_1 = arith.constant 0 : index
    %4 = vector.load %arg3[%c0_0, %c0_1] : memref<8x12xbf16, #tpu.memory_space<vmem>>, vector<8x12xbf16>
    %cst = arith.constant dense<0.000000e+00> : vector<8x132xf32>
    %5 = tpu.matmul %4, %3, %cst {dimension_numbers = #tpu.dot_dimension_numbers<[1], [0], [0], [1], [0, 0, 1, 1], [], []>} : vector<8x12xbf16>, vector<12x132xbf16>, vector<8x132xf32> -> vector<8x132xf32>
    %c4_i32 = arith.constant 4 : i32
    %6 = arith.subi %1, %c4_i32 : i32
    %7 = tpu.iota {dimensions = array<i32: 1>} : vector<1x132xi32>
    %8 = vector.broadcast %6 : i32 to vector<1x132xi32>
    %9 = arith.addi %8, %7 : vector<1x132xi32>
    %c0_i32 = arith.constant 0 : i32
    %10 = vector.broadcast %c0_i32 : i32 to vector<1x132xi32>
    %11 = arith.cmpi sge, %9, %10 : vector<1x132xi32>
    %c40_i32 = arith.constant 40 : i32
    %12 = vector.broadcast %c40_i32 : i32 to vector<1x132xi32>
    %13 = arith.cmpi slt, %9, %12 : vector<1x132xi32>
    %14 = arith.andi %11, %13 : vector<1x132xi1>
    %c20_i32 = arith.constant 20 : i32
    %c0_i32_2 = arith.constant 0 : i32
    %15 = arith.cmpi eq, %c20_i32, %c0_i32_2 : i32
    %c1_i32 = arith.constant 1 : i32
    %16 = arith.select %15, %c1_i32, %c20_i32 : i32
    %17 = vector.broadcast %16 : i32 to vector<1x132xi32>
    %18 = arith.remsi %9, %17 : vector<1x132xi32>
    %c0_i32_3 = arith.constant 0 : i32
    %19 = vector.broadcast %c0_i32_3 : i32 to vector<1x132xi32>
    %20 = arith.cmpi ne, %18, %19 : vector<1x132xi32>
    %c0_i32_4 = arith.constant 0 : i32
    %21 = vector.broadcast %c0_i32_4 : i32 to vector<1x132xi32>
    %22 = arith.cmpi slt, %18, %21 : vector<1x132xi32>
    %c0_i32_5 = arith.constant 0 : i32
    %23 = arith.cmpi slt, %16, %c0_i32_5 : i32
    %24 = vector.broadcast %23 : i1 to vector<1x132xi1>
    %25 = vector.broadcast %24 : vector<1x132xi1> to vector<1x132xi1>
    %26 = arith.xori %22, %25 : vector<1x132xi1>
    %27 = arith.andi %26, %20 : vector<1x132xi1>
    %28 = vector.broadcast %16 : i32 to vector<1x132xi32>
    %29 = arith.addi %18, %28 : vector<1x132xi32>
    %30 = arith.select %27, %29, %18 : vector<1x132xi1>, vector<1x132xi32>
    %c4_i32_6 = arith.constant 4 : i32
    %31 = vector.broadcast %c4_i32_6 : i32 to vector<1x132xi32>
    %32 = arith.cmpi sge, %30, %31 : vector<1x132xi32>
    %33 = arith.andi %14, %32 : vector<1x132xi1>
    %c0_7 = arith.constant 0 : index
    %c0_8 = arith.constant 0 : index
    %34 = vector.load %arg4[%c0_7, %c0_8] : memref<8x1xf32, #tpu.memory_space<vmem>>, vector<8x1xf32>
    %35 = vector.broadcast %34 : vector<8x1xf32> to vector<8x132xf32>
    %36 = arith.addf %5, %35 : vector<8x132xf32>
    %cst_9 = arith.constant 0.000000e+00 : f32
    %37 = vector.broadcast %cst_9 : f32 to vector<8x132xf32>
    %38 = arith.maximumf %36, %37 : vector<8x132xf32>
    %cst_10 = arith.constant 0.000000e+00 : f32
    %39 = vector.shape_cast %33 : vector<1x132xi1> to vector<1x132xi1>
    %40 = vector.broadcast %39 : vector<1x132xi1> to vector<8x132xi1>
    %41 = vector.broadcast %cst_10 : f32 to vector<8x132xf32>
    %42 = arith.select %40, %38, %41 : vector<8x132xi1>, vector<8x132xf32>
    %43 = arith.truncf %42 : vector<8x132xf32> to vector<8x132xbf16>
    %44 = vector.extract_strided_slice %43 {offsets = [0, 0], sizes = [8, 128], strides = [1, 1]} : vector<8x132xbf16> to vector<8x128xbf16>
    %45 = vector.extract_strided_slice %43 {offsets = [0, 2], sizes = [8, 128], strides = [1, 1]} : vector<8x132xbf16> to vector<8x128xbf16>
    %46 = vector.extract_strided_slice %43 {offsets = [0, 4], sizes = [8, 128], strides = [1, 1]} : vector<8x132xbf16> to vector<8x128xbf16>
    %47 = tpu.concatenate %44, %45, %46 in 0 : vector<8x128xbf16>, vector<8x128xbf16>, vector<8x128xbf16> -> vector<24x128xbf16>
    %c0_11 = arith.constant 0 : index
    %c0_12 = arith.constant 0 : index
    %48 = vector.load %arg5[%c0_11, %c0_12] : memref<8x24xbf16, #tpu.memory_space<vmem>>, vector<8x24xbf16>
    %cst_13 = arith.constant dense<0.000000e+00> : vector<8x128xf32>
    %49 = tpu.matmul %48, %47, %cst_13 {dimension_numbers = #tpu.dot_dimension_numbers<[1], [0], [0], [1], [0, 0, 1, 1], [], []>} : vector<8x24xbf16>, vector<24x128xbf16>, vector<8x128xf32> -> vector<8x128xf32>
    %c0_14 = arith.constant 0 : index
    %c0_15 = arith.constant 0 : index
    %50 = vector.load %arg6[%c0_14, %c0_15] : memref<8x1xf32, #tpu.memory_space<vmem>>, vector<8x1xf32>
    %51 = vector.broadcast %50 : vector<8x1xf32> to vector<8x128xf32>
    %52 = arith.addf %49, %51 : vector<8x128xf32>
    %cst_16 = arith.constant 0.000000e+00 : f32
    %53 = vector.broadcast %cst_16 : f32 to vector<8x128xf32>
    %54 = arith.maximumf %52, %53 : vector<8x128xf32>
    %c0_17 = arith.constant 0 : index
    %c0_18 = arith.constant 0 : index
    %55 = vector.load %arg7[%c0_17, %c0_18] : memref<8x4xbf16, #tpu.memory_space<vmem>>, vector<8x4xbf16>
    %c0_19 = arith.constant 0 : index
    %56 = arith.index_cast %1 : i32 to index
    %57 = vector.load %arg2[%c0_19, %56] : memref<4x128xbf16, #tpu.memory_space<vmem>>, vector<4x128xbf16>
    %cst_20 = arith.constant dense<0.000000e+00> : vector<8x128xf32>
    %58 = tpu.matmul %55, %57, %cst_20 {dimension_numbers = #tpu.dot_dimension_numbers<[1], [0], [0], [1], [0, 0, 1, 1], [], []>} : vector<8x4xbf16>, vector<4x128xbf16>, vector<8x128xf32> -> vector<8x128xf32>
    %c0_21 = arith.constant 0 : index
    %c0_22 = arith.constant 0 : index
    %59 = vector.load %arg8[%c0_21, %c0_22] : memref<8x1xf32, #tpu.memory_space<vmem>>, vector<8x1xf32>
    %60 = vector.broadcast %59 : vector<8x1xf32> to vector<8x128xf32>
    %61 = arith.addf %58, %60 : vector<8x128xf32>
    %62 = arith.addf %54, %61 : vector<8x128xf32>
    %cst_23 = arith.constant 0.000000e+00 : f32
    %63 = vector.broadcast %cst_23 : f32 to vector<8x128xf32>
    %64 = arith.maximumf %62, %63 : vector<8x128xf32>
    %65 = arith.truncf %64 : vector<8x128xf32> to vector<8x128xbf16>
    %c0_24 = arith.constant 0 : index
    %c0_25 = arith.constant 0 : index
    %66 = vector.load %arg9[%c0_24, %c0_25] : memref<8x128xbf16, #tpu.memory_space<vmem>>, vector<8x128xbf16>
    tpu.vector_store %arg9[%c0_24, %c0_25], %65 {strides = array<i32>} : memref<8x128xbf16, #tpu.memory_space<vmem>>, vector<8x128xbf16>,
    return
  }
  func.func @transform_0(%arg0: i32) -> (i32, i32) {
    %c0_i32 = arith.constant 0 : i32
    %c0_i32_0 = arith.constant 0 : i32
    %c0_i32_1 = arith.constant 0 : i32
    return %c0_i32, %c0_i32_0 : i32, i32
  }
  func.func @transform_1(%arg0: i32) -> (i32, i32) {
    %c0_i32 = arith.constant 0 : i32
    %c0_i32_0 = arith.constant 0 : i32
    %c0_i32_1 = arith.constant 0 : i32
    return %c0_i32, %c0_i32_0 : i32, i32
  }
  func.func @transform_2(%arg0: i32) -> (i32, i32) {
    %c0_i32 = arith.constant 0 : i32
    %c0_i32_0 = arith.constant 0 : i32
    %c0_i32_1 = arith.constant 0 : i32
    return %c0_i32, %c0_i32_0 : i32, i32
  }
  func.func @transform_3(%arg0: i32) -> (i32, i32) {
    %c0_i32 = arith.constant 0 : i32
    %c0_i32_0 = arith.constant 0 : i32
    %c0_i32_1 = arith.constant 0 : i32
    return %c0_i32, %c0_i32_0 : i32, i32
  }
  func.func @transform_4(%arg0: i32) -> (i32, i32) {
    %c0_i32 = arith.constant 0 : i32
    %c0_i32_0 = arith.constant 0 : i32
    %c0_i32_1 = arith.constant 0 : i32
    return %c0_i32, %c0_i32_0 : i32, i32
  }
  func.func @transform_5(%arg0: i32) -> (i32, i32) {
    %c0_i32 = arith.constant 0 : i32
    %c0_i32_0 = arith.constant 0 : i32
    %c0_i32_1 = arith.constant 0 : i32
    return %c0_i32, %c0_i32_0 : i32, i32
  }
  func.func @transform_6(%arg0: i32) -> (i32, i32) {
    %c0_i32 = arith.constant 0 : i32
    %c0_i32_0 = arith.constant 0 : i32
    %c0_i32_1 = arith.constant 0 : i32
    return %c0_i32, %c0_i32_0 : i32, i32
  }
  func.func @transform_7(%arg0: i32) -> (i32, i32) {
    %c0_i32 = arith.constant 0 : i32
    %c0_i32_0 = arith.constant 0 : i32
    %c0_i32_1 = arith.constant 0 : i32
    return %c0_i32, %c0_i32_0 : i32, i32
  }
  func.func @transform_8(%arg0: i32) -> (i32, i32) {
    %c0_i32 = arith.constant 0 : i32
    %c0_i32_0 = arith.constant 0 : i32
    return %c0_i32, %arg0 : i32, i32
  }
}

</mosaic_0001>

<llo_original>
// kernel: tpu_custom_call.1
$region0: #{tpu_custom_call.1}
  #allocation0 [shape = 'u32[]', space=smem, size = 0x4, offset = 0x4, fixed_abs, tag = 'smem constant byte address 0x4 - core index']
  #allocation1 [shape = 'u32[72,128]{1,0:T(1,128)}', space=vmem, size = 0x9000, scoped, tag = 'internal scratch']
  %s0 = inlined_call_operand.vmem [shape: bf16[12,136], index: 0, kind: input, shape index: {}]
  %s1 = inlined_call_operand.vmem [shape: bf16[4,128], index: 1, kind: input, shape index: {}]
  %s2 = inlined_call_operand.vmem [shape: bf16[8,12], index: 2, kind: input, shape index: {}]
  %s3 = inlined_call_operand.vmem [shape: f32[8,1], index: 3, kind: input, shape index: {}]
  %s4 = inlined_call_operand.vmem [shape: bf16[8,24], index: 4, kind: input, shape index: {}]
  %s5 = inlined_call_operand.vmem [shape: f32[8,1], index: 5, kind: input, shape index: {}]
  %s6 = inlined_call_operand.vmem [shape: bf16[8,4], index: 6, kind: input, shape index: {}]
  %s7 = inlined_call_operand.vmem [shape: f32[8,1], index: 7, kind: input, shape index: {}]
  %s8 = inlined_call_operand.hbm [shape: bf16[8,128], index: 8, kind: output, shape index: {}]
  %s9 = sld [smem:[#allocation0]]
  $region42: #{tpu_custom_call.1} parent=0
    _
  %s11 = ssub.s32 1, %s9
  %s12 = scalar_select 0, %s11, %s9
  $region1: #{tpu_custom_call.1} parent=0
    #allocation2 [shape = 'u8[2048]{0}', space=vmem, size = 0x800, scoped, tag = 'output window, operand 0, single buffered']
    #allocation3 [shape = 's32[1]{0}', space=sflag, size = 0x4, scoped, tag = 'scoped memory for tpu_custom_call.1']
    %13 = vsyncpa [#allocation3], 0
    // Predicated region
    $region2: #{tpu_custom_call.1} parent=1 // pred_check
      _
    $region3: #{tpu_custom_call.1} parent=1 // pred_check_branch
      %15 = sbr.rel (0) target = $region5
    $region4: #{tpu_custom_call.1} parent=1 // pred_region
      _
    $region5: #{tpu_custom_call.1} parent=1 // pred_fallthru
      _
    // Predicated region
    $region6: #{tpu_custom_call.1} parent=1 // pred_check
      _
    $region7: #{tpu_custom_call.1} parent=1 // pred_check_branch
      %17 = sbr.rel (0) target = $region9
    $region8: #{tpu_custom_call.1} parent=1 // pred_region
      _
    $region9: #{tpu_custom_call.1} parent=1 // pred_fallthru
      _
    // Predicated region
    $region10: #{tpu_custom_call.1} parent=1 // pred_check
      _
    $region11: #{tpu_custom_call.1} parent=1 // pred_check_branch
      %19 = sbr.rel (0) target = $region13
    $region12: #{tpu_custom_call.1} parent=1 // pred_region
      _
    $region13: #{tpu_custom_call.1} parent=1 // pred_fallthru
      _
    // Predicated region
    $region14: #{tpu_custom_call.1} parent=1 // pred_check
      _
    $region15: #{tpu_custom_call.1} parent=1 // pred_check_branch
      %21 = sbr.rel (0) target = $region17
    $region16: #{tpu_custom_call.1} parent=1 // pred_region
      _
    $region17: #{tpu_custom_call.1} parent=1 // pred_fallthru
      _
    // Predicated region
    $region18: #{tpu_custom_call.1} parent=1 // pred_check
      _
    $region19: #{tpu_custom_call.1} parent=1 // pred_check_branch
      %23 = sbr.rel (0) target = $region21
    $region20: #{tpu_custom_call.1} parent=1 // pred_region
      _
    $region21: #{tpu_custom_call.1} parent=1 // pred_fallthru
      _
    // Predicated region
    $region22: #{tpu_custom_call.1} parent=1 // pred_check
      _
    $region23: #{tpu_custom_call.1} parent=1 // pred_check_branch
      %25 = sbr.rel (0) target = $region25
    $region24: #{tpu_custom_call.1} parent=1 // pred_region
      _
    $region25: #{tpu_custom_call.1} parent=1 // pred_fallthru
      _
    // Predicated region
    $region26: #{tpu_custom_call.1} parent=1 // pred_check
      _
    $region27: #{tpu_custom_call.1} parent=1 // pred_check_branch
      %27 = sbr.rel (0) target = $region29
    $region28: #{tpu_custom_call.1} parent=1 // pred_region
      _
    $region29: #{tpu_custom_call.1} parent=1 // pred_fallthru
      _
    // Predicated region
    $region30: #{tpu_custom_call.1} parent=1 // pred_check
      _
    $region31: #{tpu_custom_call.1} parent=1 // pred_check_branch
      %29 = sbr.rel (0) target = $region33
    $region32: #{tpu_custom_call.1} parent=1 // pred_region
      _
    $region33: #{tpu_custom_call.1} parent=1 // pred_fallthru
      _
    %s31 = smul.u32 0, 128
    %s32 = sshra.s32 %s31, 7
    %s33 = sand.u32 %s31, 127
    %s34 = smul.addr %s32, 4
    %s35 = scalar_lea.vmem %s0, %s34
    %v36 = vld [vmem:[%s35] sm:$0xff]
    %v37 = vld [vmem:[%s35 + $0x8] sm:$0x33]
    %v38 = vld [vmem:[%s2] sm:$0xf]
    %s39 = ssub.s32 %s31, 4
    %v40 = vlaneseq
    %v41 = vand.u32 %v40, 127
    %v42 = vadd.s32 %v41, 128
    %v43 = vstv %s39
    %v44 = vadd.s32 %v43, %v41
    %v45 = vadd.s32 %v43, %v42
    %vm46 = vcmp.ge.s32.totalorder %v44, 0
    %vm47 = vcmp.ge.s32.totalorder %v45, 0
    %vm48 = vcmp.lt.s32.totalorder %v44, 40
    %vm49 = vcmp.lt.s32.totalorder %v45, 40
    %vm50 = vmand %vm46, %vm48
    %vm51 = vmand %vm47, %vm49
    %vm52 = vcmp.lt.s32.totalorder %v44, 0
    %v53 = vsub.s32 0, %v44
    %v54 = vsel %vm52, %v53, %v44
    %v55 = vand.u32 %v54, 65535
    %v56 = vshrl.u32 %v54, 16
    %v58 = vmul.u32 %v55, 52429
    %v59 = vmul.u32 %v55, 52428
    %v60 = vmul.u32 %v56, 52429
    %v61 = vmul.u32 %v56, 52428
    %v62 = vshll.u32 %v59, 16
    %v63 = vshrl.u32 %v59, 16
    %v64 = vshll.u32 %v60, 16
    %v65 = vshrl.u32 %v60, 16
    %vm66 = vc.u32 %v58, %v62
    %v67 = vsel %vm66, 1, 0
    %v68 = vadd.s32 %v58, %v62
    %v69 = vadd.s32 %v61, %v67
    %vm70 = vc.u32 %v68, %v64
    %v71 = vsel %vm70, 1, 0
    %v72 = vadd.s32 %v68, %v64
    %v73 = vadd.s32 %v69, %v71
    %v74 = vadd.s32 %v73, %v63
    %v75 = vadd.s32 %v74, %v65
    %v76 = vshrl.u32 %v75, 4
    %v77 = vmul.u32 %v76, 20
    %v78 = vsub.s32 %v54, %v77
    %v79 = vsub.s32 0, %v78
    %v80 = vsel %vm52, %v79, %v78
    %vm81 = vcmp.lt.s32.totalorder %v45, 0
    %v82 = vsub.s32 0, %v45
    %v83 = vsel %vm81, %v82, %v45
    %v84 = vand.u32 %v83, 65535
    %v85 = vshrl.u32 %v83, 16
    %v87 = vmul.u32 %v84, 52429
    %v88 = vmul.u32 %v84, 52428
    %v89 = vmul.u32 %v85, 52429
    %v90 = vmul.u32 %v85, 52428
    %v91 = vshll.u32 %v88, 16
    %v92 = vshrl.u32 %v88, 16
    %v93 = vshll.u32 %v89, 16
    %v94 = vshrl.u32 %v89, 16
    %vm95 = vc.u32 %v87, %v91
    %v96 = vsel %vm95, 1, 0
    %v97 = vadd.s32 %v87, %v91
    %v98 = vadd.s32 %v90, %v96
    %vm99 = vc.u32 %v97, %v93
    %v100 = vsel %vm99, 1, 0
    %v101 = vadd.s32 %v97, %v93
    %v102 = vadd.s32 %v98, %v100
    %v103 = vadd.s32 %v102, %v92
    %v104 = vadd.s32 %v103, %v94
    %v105 = vshrl.u32 %v104, 4
    %v106 = vmul.u32 %v105, 20
    %v107 = vsub.s32 %v83, %v106
    %v108 = vsub.s32 0, %v107
    %v109 = vsel %vm81, %v108, %v107
    %vm110 = vcmp.ne.s32.totalorder %v80, 0
    %vm111 = vcmp.ne.s32.totalorder %v109, 0
    %vm112 = vcmp.lt.s32.totalorder %v80, 0
    %vm113 = vcmp.lt.s32.totalorder %v109, 0
    %vm114 = vmand %vm112, %vm110
    %vm115 = vmand %vm113, %vm111
    %v116 = vadd.s32 %v80, 20
    %v117 = vadd.s32 %v109, 20
    %v118 = vsel %vm114, %v116, %v80
    %v119 = vsel %vm115, %v117, %v109
    %vm120 = vcmp.ge.s32.totalorder %v118, 4
    %vm121 = vcmp.ge.s32.totalorder %v119, 4
    %vm122 = vmand %vm50, %vm120
    %vm123 = vmand %vm51, %vm121
    %v124 = vld [vmem:[%s3] sm:$0xff]
    %126 = vset.pattern.permute.xlu0 0
    %127 = vperm.xlu0 %126, %v124
    %v128 = vpop.permute.xlu0 %127
    %v132 = vunpack.c.l.b16 %v36
    %v133 = vunpack.c.h.b16 %v36
    %v134 = vunpack.c.l.b16 %v37
    %v135 = vunpack.c.h.b16 %v37
    %v136 = vpack.c.b16 %v134, %v132
    %v137 = vpack.c.b16 %v135, %v133
    %vm138 = vcmask 97280
    %v140 = vsel %vm138, %v38, 0
    %vm142 = vcmask 1045504
    %v144 = vsel %vm142, %v136, 0
    %v147 = vsel %vm142, %v137, 0
    %149 = vmatpush.bf16.msra.mxu0 0
    %150 = vmatpush.bf16.msra.mxu0 0
    %151 = vmatpush.bf16.msra.mxu0 0
    %152 = vmatpush.bf16.msra.mxu0 0
    %153 = vmatpush.bf16.msra.mxu0 0
    %154 = vmatpush.bf16.msra.mxu0 0
    %155 = vmatpush.bf16.msra.mxu0 0
    %156 = vmatpush.bf16.msra.mxu0 %v144
    %157 = vmatmul.bf16.gmra.mxu0 %v140
    %v158 = vpop.f32.mrf.mxu0
    %v159 = vadd.f32 %v128, %v158
    %v160 = vpop.f32.mrf.mxu0
    %161 = vdwg.mxu0
    %162 = vmatpush.bf16.msra.mxu0 0
    %163 = vmatpush.bf16.msra.mxu0 0
    %164 = vmatpush.bf16.msra.mxu0 0
    %165 = vmatpush.bf16.msra.mxu0 0
    %166 = vmatpush.bf16.msra.mxu0 0
    %167 = vmatpush.bf16.msra.mxu0 0
    %168 = vmatpush.bf16.msra.mxu0 0
    %169 = vmatpush.bf16.msra.mxu0 %v147
    %170 = vmatmul.bf16.gmra.mxu0 %v140
    %v171 = vpop.f32.mrf.mxu0
    %v172 = vadd.f32 %v128, %v171
    %v173 = vpop.f32.mrf.mxu0
    %174 = vdwg.mxu0
    %v175 = vmax.f32 %v159, 0.0
    %v176 = vmax.f32 %v172, 0.0
    %v177 = vsel %vm122, 1, 0
    %v178 = vsel %vm123, 1, 0
    %vm179 = vcmp.eq.s32.totalorder %v177, 1
    %vm180 = vcmp.eq.s32.totalorder %v178, 1
    %v181 = vsel %vm179, %v175, 0.0
    %v182 = vsel %vm180, %v176, 0.0
    %v183 = vpack.c.bf16 %v182, %v181
    %v185 = vunpack.c.l.b16 %v183
    %v186 = vunpack.c.h.b16 %v183
    %v187 = vpack.c.b16 %v185, %v185
    %v188 = vpack.c.b16 %v186, %v186
    %189 = vrot.lane.b32.xlu0 %v187, 126
    %v190 = vpop.permute.xlu0 %189
    %191 = vrot.lane.b32.xlu0 %v188, 126
    %v192 = vpop.permute.xlu0 %191
    %vm193 = vcmask 1031168
    %v194 = vsel %vm193, %v190, %v192
    %195 = vrot.lane.b32.xlu0 %v187, 124
    %v196 = vpop.permute.xlu0 %195
    %197 = vrot.lane.b32.xlu0 %v188, 124
    %v198 = vpop.permute.xlu0 %197
    %vm199 = vcmask 1014784
    %v200 = vsel %vm199, %v196, %v198
    %vm201 = vcmask 1043456
    %v204 = vsel %vm201, %v183, %v194
    %v206 = vld [vmem:[%s4] sm:$0xf]
    %v207 = vld [vmem:[%s5] sm:$0xff]
    %209 = vset.pattern.permute.xlu0 0
    %210 = vperm.xlu0 %209, %v207
    %v211 = vpop.permute.xlu0 %210
    %vm213 = vcmask 195584
    %v215 = vsel %vm213, %v206, 0
    %v218 = vsel %vm201, %v200, 0
    %220 = vmatpush.bf16.msra.mxu0 0
    %221 = vmatpush.bf16.msra.mxu0 0
    %222 = vmatpush.bf16.msra.mxu0 0
    %223 = vmatpush.bf16.msra.mxu0 0
    %224 = vmatpush.bf16.msra.mxu0 0
    %225 = vmatpush.bf16.msra.mxu0 0
    %226 = vmatpush.bf16.msra.mxu0 %v218
    %227 = vmatpush.bf16.msra.mxu0 %v204
    %228 = vmatmul.bf16.gmra.mxu0 %v215
    %v229 = vpop.f32.mrf.mxu0
    %v230 = vadd.f32 %v211, %v229
    %v231 = vpop.f32.mrf.mxu0
    %232 = vdwg.mxu0
    %v233 = vmax.f32 %v230, 0.0
    %v234 = vld [vmem:[%s6] sm:$0xf]
    %s235 = smul.addr %s32, 2
    %s236 = scalar_lea.vmem %s1, %s235
    %v237 = vld [vmem:[%s236] sm:$0x3]
    %v238 = vld [vmem:[%s7] sm:$0xff]
    %240 = vset.pattern.permute.xlu0 0
    %241 = vperm.xlu0 %240, %v238
    %v242 = vpop.permute.xlu0 %241
    %vm244 = vcmask 31744
    %v246 = vsel %vm244, %v234, 0
    %vm248 = vcmask 1041408
    %v250 = vsel %vm248, %v237, 0
    %252 = vmatpush.bf16.msra.mxu0 0
    %253 = vmatpush.bf16.msra.mxu0 0
    %254 = vmatpush.bf16.msra.mxu0 0
    %255 = vmatpush.bf16.msra.mxu0 0
    %256 = vmatpush.bf16.msra.mxu0 0
    %257 = vmatpush.bf16.msra.mxu0 0
    %258 = vmatpush.bf16.msra.mxu0 0
    %259 = vmatpush.bf16.msra.mxu0 %v250
    %260 = vmatmul.bf16.gmra.mxu0 %v246
    %v261 = vpop.f32.mrf.mxu0
    %v262 = vadd.f32 %v242, %v261
    %v263 = vpop.f32.mrf.mxu0
    %264 = vdwg.mxu0
    %v265 = vadd.f32 %v233, %v262
    %v266 = vmax.f32 %v265, 0.0
    %v267 = vpack.c.bf16 %v266, %v266
    %268 = vst [vmem:[#allocation2] sm:$0xf] %v267
    // Predicated region
    $region34: #{tpu_custom_call.1} parent=1 // pred_check
      _
    $region35: #{tpu_custom_call.1} parent=1 // pred_check_branch
      %270 = sbr.rel (0) target = $region37
    $region36: #{tpu_custom_call.1} parent=1 // pred_region
      %272 = vsyncadd [#allocation3], 0
      %s274 = sshll.u32 [#allocation2], 4
      %s275 = int_to_ptr.vmem [resolvable:$true] %s274
      %s276 = sshll.u32 %s8, 4
      %s277 = int_to_ptr.hbm [resolvable:$true] %s276
      %279 = dma.vmem_to_hbm [thread:$0]  %s275, 64, %s277, [#allocation3]
    $region37: #{tpu_custom_call.1} parent=1 // pred_fallthru
      _
    // Predicated region
    $region38: #{tpu_custom_call.1} parent=1 // pred_check
      _
    $region39: #{tpu_custom_call.1} parent=1 // pred_check_branch
      %281 = sbr.rel (0) target = $region41
    $region40: #{tpu_custom_call.1} parent=1 // pred_region
      %283 = dma.done [#allocation3], 64
    $region41: #{tpu_custom_call.1} parent=1 // pred_fallthru
      _
    %284 = vsyncpa [#allocation3], 1

// kernel: tpu_custom_call.1
$region0: #{tpu_custom_call.1}
  #allocation0 [shape = 'u32[]', space=smem, size = 0x4, offset = 0x4, fixed_abs, tag = 'smem constant byte address 0x4 - core index']
  #allocation1 [shape = 'u32[72,128]{1,0:T(1,128)}', space=vmem, size = 0x9000, scoped, tag = 'internal scratch']
  %s0 = inlined_call_operand.vmem [shape: bf16[12,136], index: 0, kind: input, shape index: {}]
  %s1 = inlined_call_operand.vmem [shape: bf16[4,128], index: 1, kind: input, shape index: {}]
  %s2 = inlined_call_operand.vmem [shape: bf16[8,12], index: 2, kind: input, shape index: {}]
  %s3 = inlined_call_operand.vmem [shape: f32[8,1], index: 3, kind: input, shape index: {}]
  %s4 = inlined_call_operand.vmem [shape: bf16[8,24], index: 4, kind: input, shape index: {}]
  %s5 = inlined_call_operand.vmem [shape: f32[8,1], index: 5, kind: input, shape index: {}]
  %s6 = inlined_call_operand.vmem [shape: bf16[8,4], index: 6, kind: input, shape index: {}]
  %s7 = inlined_call_operand.vmem [shape: f32[8,1], index: 7, kind: input, shape index: {}]
  %s8 = inlined_call_operand.hbm [shape: bf16[8,128], index: 8, kind: output, shape index: {}]
  %s9 = sld [smem:[#allocation0]]
  $region42: #{tpu_custom_call.1} parent=0
    _
  %s11 = ssub.s32 1, %s9
  %s12 = scalar_select 0, %s11, %s9
  $region1: #{tpu_custom_call.1} parent=0
    #allocation2 [shape = 'u8[2048]{0}', space=vmem, size = 0x800, scoped, tag = 'output window, operand 0, single buffered']
    #allocation3 [shape = 's32[1]{0}', space=sflag, size = 0x4, scoped, tag = 'scoped memory for tpu_custom_call.1']
    %13 = vsyncpa [#allocation3], 0
    // Predicated region
    $region2: #{tpu_custom_call.1} parent=1 // pred_check
      _
    $region3: #{tpu_custom_call.1} parent=1 // pred_check_branch
      %15 = sbr.rel (0) target = $region5
    $region4: #{tpu_custom_call.1} parent=1 // pred_region
      _
    $region5: #{tpu_custom_call.1} parent=1 // pred_fallthru
      _
    // Predicated region
    $region6: #{tpu_custom_call.1} parent=1 // pred_check
      _
    $region7: #{tpu_custom_call.1} parent=1 // pred_check_branch
      %17 = sbr.rel (0) target = $region9
    $region8: #{tpu_custom_call.1} parent=1 // pred_region
      _
    $region9: #{tpu_custom_call.1} parent=1 // pred_fallthru
      _
    // Predicated region
    $region10: #{tpu_custom_call.1} parent=1 // pred_check
      _
    $region11: #{tpu_custom_call.1} parent=1 // pred_check_branch
      %19 = sbr.rel (0) target = $region13
    $region12: #{tpu_custom_call.1} parent=1 // pred_region
      _
    $region13: #{tpu_custom_call.1} parent=1 // pred_fallthru
      _
    // Predicated region
    $region14: #{tpu_custom_call.1} parent=1 // pred_check
      _
    $region15: #{tpu_custom_call.1} parent=1 // pred_check_branch
      %21 = sbr.rel (0) target = $region17
    $region16: #{tpu_custom_call.1} parent=1 // pred_region
      _
    $region17: #{tpu_custom_call.1} parent=1 // pred_fallthru
      _
    // Predicated region
    $region18: #{tpu_custom_call.1} parent=1 // pred_check
      _
    $region19: #{tpu_custom_call.1} parent=1 // pred_check_branch
      %23 = sbr.rel (0) target = $region21
    $region20: #{tpu_custom_call.1} parent=1 // pred_region
      _
    $region21: #{tpu_custom_call.1} parent=1 // pred_fallthru
      _
    // Predicated region
    $region22: #{tpu_custom_call.1} parent=1 // pred_check
      _
    $region23: #{tpu_custom_call.1} parent=1 // pred_check_branch
      %25 = sbr.rel (0) target = $region25
    $region24: #{tpu_custom_call.1} parent=1 // pred_region
      _
    $region25: #{tpu_custom_call.1} parent=1 // pred_fallthru
      _
    // Predicated region
    $region26: #{tpu_custom_call.1} parent=1 // pred_check
      _
    $region27: #{tpu_custom_call.1} parent=1 // pred_check_branch
      %27 = sbr.rel (0) target = $region29
    $region28: #{tpu_custom_call.1} parent=1 // pred_region
      _
    $region29: #{tpu_custom_call.1} parent=1 // pred_fallthru
      _
    // Predicated region
    $region30: #{tpu_custom_call.1} parent=1 // pred_check
      _
    $region31: #{tpu_custom_call.1} parent=1 // pred_check_branch
      %29 = sbr.rel (0) target = $region33
    $region32: #{tpu_custom_call.1} parent=1 // pred_region
      _
    $region33: #{tpu_custom_call.1} parent=1 // pred_fallthru
      _
    %s31 = smul.u32 0, 128
    %s32 = sshra.s32 %s31, 7
    %s33 = sand.u32 %s31, 127
    %s34 = smul.addr %s32, 4
    %s35 = scalar_lea.vmem %s0, %s34
    %v36 = vld [vmem:[%s35] sm:$0xff]
    %v37 = vld [vmem:[%s35 + $0x8] sm:$0x33]
    %v38 = vld [vmem:[%s2] sm:$0xf]
    %s39 = ssub.s32 %s31, 4
    %v40 = vlaneseq
    %v41 = vand.u32 %v40, 127
    %v42 = vadd.s32 %v41, 128
    %v43 = vstv %s39
    %v44 = vadd.s32 %v43, %v41
    %v45 = vadd.s32 %v43, %v42
    %vm46 = vcmp.ge.s32.totalorder %v44, 0
    %vm47 = vcmp.ge.s32.totalorder %v45, 0
    %vm48 = vcmp.lt.s32.totalorder %v44, 40
    %vm49 = vcmp.lt.s32.totalorder %v45, 40
    %vm50 = vmand %vm46, %vm48
    %vm51 = vmand %vm47, %vm49
    %vm52 = vcmp.lt.s32.totalorder %v44, 0
    %v53 = vsub.s32 0, %v44
    %v54 = vsel %vm52, %v53, %v44
    %v55 = vand.u32 %v54, 65535
    %v56 = vshrl.u32 %v54, 16
    %v58 = vmul.u32 %v55, 52429
    %v59 = vmul.u32 %v55, 52428
    %v60 = vmul.u32 %v56, 52429
    %v61 = vmul.u32 %v56, 52428
    %v62 = vshll.u32 %v59, 16
    %v63 = vshrl.u32 %v59, 16
    %v64 = vshll.u32 %v60, 16
    %v65 = vshrl.u32 %v60, 16
    %vm66 = vc.u32 %v58, %v62
    %v67 = vsel %vm66, 1, 0
    %v68 = vadd.s32 %v58, %v62
    %v69 = vadd.s32 %v61, %v67
    %vm70 = vc.u32 %v68, %v64
    %v71 = vsel %vm70, 1, 0
    %v72 = vadd.s32 %v68, %v64
    %v73 = vadd.s32 %v69, %v71
    %v74 = vadd.s32 %v73, %v63
    %v75 = vadd.s32 %v74, %v65
    %v76 = vshrl.u32 %v75, 4
    %v77 = vmul.u32 %v76, 20
    %v78 = vsub.s32 %v54, %v77
    %v79 = vsub.s32 0, %v78
    %v80 = vsel %vm52, %v79, %v78
    %vm81 = vcmp.lt.s32.totalorder %v45, 0
    %v82 = vsub.s32 0, %v45
    %v83 = vsel %vm81, %v82, %v45
    %v84 = vand.u32 %v83, 65535
    %v85 = vshrl.u32 %v83, 16
    %v87 = vmul.u32 %v84, 52429
    %v88 = vmul.u32 %v84, 52428
    %v89 = vmul.u32 %v85, 52429
    %v90 = vmul.u32 %v85, 52428
    %v91 = vshll.u32 %v88, 16
    %v92 = vshrl.u32 %v88, 16
    %v93 = vshll.u32 %v89, 16
    %v94 = vshrl.u32 %v89, 16
    %vm95 = vc.u32 %v87, %v91
    %v96 = vsel %vm95, 1, 0
    %v97 = vadd.s32 %v87, %v91
    %v98 = vadd.s32 %v90, %v96
    %vm99 = vc.u32 %v97, %v93
    %v100 = vsel %vm99, 1, 0
    %v101 = vadd.s32 %v97, %v93
    %v102 = vadd.s32 %v98, %v100
    %v103 = vadd.s32 %v102, %v92
    %v104 = vadd.s32 %v103, %v94
    %v105 = vshrl.u32 %v104, 4
    %v106 = vmul.u32 %v105, 20
    %v107 = vsub.s32 %v83, %v106
    %v108 = vsub.s32 0, %v107
    %v109 = vsel %vm81, %v108, %v107
    %vm110 = vcmp.ne.s32.totalorder %v80, 0
    %vm111 = vcmp.ne.s32.totalorder %v109, 0
    %vm112 = vcmp.lt.s32.totalorder %v80, 0
    %vm113 = vcmp.lt.s32.totalorder %v109, 0
    %vm114 = vmand %vm112, %vm110
    %vm115 = vmand %vm113, %vm111
    %v116 = vadd.s32 %v80, 20
    %v117 = vadd.s32 %v109, 20
    %v118 = vsel %vm114, %v116, %v80
    %v119 = vsel %vm115, %v117, %v109
    %vm120 = vcmp.ge.s32.totalorder %v118, 4
    %vm121 = vcmp.ge.s32.totalorder %v119, 4
    %vm122 = vmand %vm50, %vm120
    %vm123 = vmand %vm51, %vm121
    %v124 = vld [vmem:[%s3] sm:$0xff]
    %126 = vset.pattern.permute.xlu0 0
    %127 = vperm.xlu0 %126, %v124
    %v128 = vpop.permute.xlu0 %127
    %v132 = vunpack.c.l.b16 %v36
    %v133 = vunpack.c.h.b16 %v36
    %v134 = vunpack.c.l.b16 %v37
    %v135 = vunpack.c.h.b16 %v37
    %v136 = vpack.c.b16 %v134, %v132
    %v137 = vpack.c.b16 %v135, %v133
    %vm138 = vcmask 97280
    %v140 = vsel %vm138, %v38, 0
    %vm142 = vcmask 1045504
    %v144 = vsel %vm142, %v136, 0
    %v147 = vsel %vm142, %v137, 0
    %149 = vmatpush.bf16.msra.mxu0 0
    %150 = vmatpush.bf16.msra.mxu0 0
    %151 = vmatpush.bf16.msra.mxu0 0
    %152 = vmatpush.bf16.msra.mxu0 0
    %153 = vmatpush.bf16.msra.mxu0 0
    %154 = vmatpush.bf16.msra.mxu0 0
    %155 = vmatpush.bf16.msra.mxu0 0
    %156 = vmatpush.bf16.msra.mxu0 %v144
    %157 = vmatmul.bf16.gmra.mxu0 %v140
    %v158 = vpop.f32.mrf.mxu0
    %v159 = vadd.f32 %v128, %v158
    %v160 = vpop.f32.mrf.mxu0
    %161 = vdwg.mxu0
    %162 = vmatpush.bf16.msra.mxu0 0
    %163 = vmatpush.bf16.msra.mxu0 0
    %164 = vmatpush.bf16.msra.mxu0 0
    %165 = vmatpush.bf16.msra.mxu0 0
    %166 = vmatpush.bf16.msra.mxu0 0
    %167 = vmatpush.bf16.msra.mxu0 0
    %168 = vmatpush.bf16.msra.mxu0 0
    %169 = vmatpush.bf16.msra.mxu0 %v147
    %170 = vmatmul.bf16.gmra.mxu0 %v140
    %v171 = vpop.f32.mrf.mxu0
    %v172 = vadd.f32 %v128, %v171
    %v173 = vpop.f32.mrf.mxu0
    %174 = vdwg.mxu0
    %v175 = vmax.f32 %v159, 0.0
    %v176 = vmax.f32 %v172, 0.0
    %v177 = vsel %vm122, 1, 0
    %v178 = vsel %vm123, 1, 0
    %vm179 = vcmp.eq.s32.totalorder %v177, 1
    %vm180 = vcmp.eq.s32.totalorder %v178, 1
    %v181 = vsel %vm179, %v175, 0.0
    %v182 = vsel %vm180, %v176, 0.0
    %v183 = vpack.c.bf16 %v182, %v181
    %v185 = vunpack.c.l.b16 %v183
    %v186 = vunpack.c.h.b16 %v183
    %v187 = vpack.c.b16 %v185, %v185
    %v188 = vpack.c.b16 %v186, %v186
    %189 = vrot.lane.b32.xlu0 %v187, 126
    %v190 = vpop.permute.xlu0 %189
    %191 = vrot.lane.b32.xlu0 %v188, 126
    %v192 = vpop.permute.xlu0 %191
    %vm193 = vcmask 1031168
    %v194 = vsel %vm193, %v190, %v192
    %195 = vrot.lane.b32.xlu0 %v187, 124
    %v196 = vpop.permute.xlu0 %195
    %197 = vrot.lane.b32.xlu0 %v188, 124
    %v198 = vpop.permute.xlu0 %197
    %vm199 = vcmask 1014784
    %v200 = vsel %vm199, %v196, %v198
    %vm201 = vcmask 1043456
    %v204 = vsel %vm201, %v183, %v194
    %v206 = vld [vmem:[%s4] sm:$0xf]
    %v207 = vld [vmem:[%s5] sm:$0xff]
    %209 = vset.pattern.permute.xlu0 0
    %210 = vperm.xlu0 %209, %v207
    %v211 = vpop.permute.xlu0 %210
    %vm213 = vcmask 195584
    %v215 = vsel %vm213, %v206, 0
    %v218 = vsel %vm201, %v200, 0
    %220 = vmatpush.bf16.msra.mxu0 0
    %221 = vmatpush.bf16.msra.mxu0 0
    %222 = vmatpush.bf16.msra.mxu0 0
    %223 = vmatpush.bf16.msra.mxu0 0
    %224 = vmatpush.bf16.msra.mxu0 0
    %225 = vmatpush.bf16.msra.mxu0 0
    %226 = vmatpush.bf16.msra.mxu0 %v218
    %227 = vmatpush.bf16.msra.mxu0 %v204
    %228 = vmatmul.bf16.gmra.mxu0 %v215
    %v229 = vpop.f32.mrf.mxu0
    %v230 = vadd.f32 %v211, %v229
    %v231 = vpop.f32.mrf.mxu0
    %232 = vdwg.mxu0
    %v233 = vmax.f32 %v230, 0.0
    %v234 = vld [vmem:[%s6] sm:$0xf]
    %s235 = smul.addr %s32, 2
    %s236 = scalar_lea.vmem %s1, %s235
    %v237 = vld [vmem:[%s236] sm:$0x3]
    %v238 = vld [vmem:[%s7] sm:$0xff]
    %240 = vset.pattern.permute.xlu0 0
    %241 = vperm.xlu0 %240, %v238
    %v242 = vpop.permute.xlu0 %241
    %vm244 = vcmask 31744
    %v246 = vsel %vm244, %v234, 0
    %vm248 = vcmask 1041408
    %v250 = vsel %vm248, %v237, 0
    %252 = vmatpush.bf16.msra.mxu0 0
    %253 = vmatpush.bf16.msra.mxu0 0
    %254 = vmatpush.bf16.msra.mxu0 0
    %255 = vmatpush.bf16.msra.mxu0 0
    %256 = vmatpush.bf16.msra.mxu0 0
    %257 = vmatpush.bf16.msra.mxu0 0
    %258 = vmatpush.bf16.msra.mxu0 0
    %259 = vmatpush.bf16.msra.mxu0 %v250
    %260 = vmatmul.bf16.gmra.mxu0 %v246
    %v261 = vpop.f32.mrf.mxu0
    %v262 = vadd.f32 %v242, %v261
    %v263 = vpop.f32.mrf.mxu0
    %264 = vdwg.mxu0
    %v265 = vadd.f32 %v233, %v262
    %v266 = vmax.f32 %v265, 0.0
    %v267 = vpack.c.bf16 %v266, %v266
    %268 = vst [vmem:[#allocation2] sm:$0xf] %v267
    // Predicated region
    $region34: #{tpu_custom_call.1} parent=1 // pred_check
      _
    $region35: #{tpu_custom_call.1} parent=1 // pred_check_branch
      %270 = sbr.rel (0) target = $region37
    $region36: #{tpu_custom_call.1} parent=1 // pred_region
      %272 = vsyncadd [#allocation3], 0
      %s274 = sshll.u32 [#allocation2], 4
      %s275 = int_to_ptr.vmem [resolvable:$true] %s274
      %s276 = sshll.u32 %s8, 4
      %s277 = int_to_ptr.hbm [resolvable:$true] %s276
      %279 = dma.vmem_to_hbm [thread:$0]  %s275, 64, %s277, [#allocation3]
    $region37: #{tpu_custom_call.1} parent=1 // pred_fallthru
      _
    // Predicated region
    $region38: #{tpu_custom_call.1} parent=1 // pred_check
      _
    $region39: #{tpu_custom_call.1} parent=1 // pred_check_branch
      %281 = sbr.rel (0) target = $region41
    $region40: #{tpu_custom_call.1} parent=1 // pred_region
      %283 = dma.done [#allocation3], 64
    $region41: #{tpu_custom_call.1} parent=1 // pred_fallthru
      _
    %284 = vsyncpa [#allocation3], 1

</llo_original>
